<compile_context>
chip_gen: v7x
topology: tpu7x:2x2x1
jax: 0.10.0
libtpu: 0.0.40
codegen_flags: <defaults>
</compile_context>

<pallas_src>
import numpy as np
import jax
import jax.numpy as jnp
from jax import lax
from jax.experimental import pallas as pl
from jax.experimental.pallas import tpu as pltpu


def backproject_kernel(inv_k_ref, depth_ref, out_ref):
    """One (batch b, row-tile t) grid step.

    inv_k_ref : (B, 16)        f32, whole array resident in SMEM (scalar reads)
    depth_ref : (1, 1, TH, Wp) f32, VMEM block
    out_ref   : (1, 4, TH, Wp) f32, VMEM block
    """
    b = pl.program_id(0)
    th, w = depth_ref.shape[2], depth_ref.shape[3]
    row0 = (pl.program_id(1) * th).astype(jnp.float32)

    # Pixel coordinates synthesized on the VPU -- zero HBM traffic for them.
    # meshgrid(indexing='xy'): x = column index, y = global row index.
    x = lax.broadcasted_iota(jnp.int32, (th, w), 1).astype(jnp.float32)
    y = lax.broadcasted_iota(jnp.int32, (th, w), 0).astype(jnp.float32) + row0

    d = depth_ref[0, 0, :, :]                                   # (TH, Wp)

    # 3x3 inv_K applied as explicit VPU FMAs (scalars broadcast from SMEM);
    # a K=3 matmul does not belong on the MXU.
    for r in range(3):
        k0 = inv_k_ref[b, 4 * r + 0]
        k1 = inv_k_ref[b, 4 * r + 1]
        k2 = inv_k_ref[b, 4 * r + 2]
        out_ref[0, r, :, :] = d * (k0 * x + k1 * y + k2)

    # Homogeneous row of ones: constant broadcast store.
    # TODO(synk): if the consumer can supply the ones row (or the 4x4 pose
    # transform is fused here), ~20% of HBM write traffic disappears.
    out_ref[0, 3, :, :] = jnp.ones((th, w), dtype=jnp.float32)


def _round_up(x, m):
    return (x + m - 1) // m * m


def _pick_row_tile(h_pad, w_pad, batch, target_elems=192 * 1024):
    """Largest multiple-of-8 row tile that divides h_pad and keeps one depth
    block around `target_elems` elements (~0.75 MiB -> ~3 MiB output block),
    amortizing the per-grid-step overhead while keeping the double-buffered
    footprint well under every generation's scoped-VMEM budget.  Backs off
    one notch if the total grid would be a single / odd number of steps
    (balances v7x's two TensorCores)."""
    th = min(h_pad, max(8, (target_elems // max(w_pad, 1)) // 8 * 8))
    while h_pad % th != 0:               # keep every block fully in-bounds
        th -= 8

    total = batch * (h_pad // th)
    if total < 2 or total % 2 != 0:
        nt = th - 8
        while nt >= 8 and h_pad % nt != 0:
            nt -= 8
        if nt >= 8:
            th = nt
    return th


def backproject_depth(depth, inv_K):
    """depth: (B, 1, H, W), inv_K: (B, 4, 4)  ->  (B, 4, H*W) f32."""
    B, _, H, W = depth.shape
    depth = depth.astype(jnp.float32)
    inv_K = inv_K.astype(jnp.float32)

    # Lane-dense / sublane-aligned padded geometry (W -> x128, H -> x8).
    W_pad = _round_up(W, 128)
    H_pad = _round_up(H, 8)
    if (H_pad, W_pad) != (H, W):
        depth = jnp.pad(depth, ((0, 0), (0, 0), (0, H_pad - H), (0, W_pad - W)))

    # Flatten inv_K to (B, 16): long axis last, no per-batch SMEM padding.
    inv_K_flat = inv_K.reshape(B, 16)

    th = _pick_row_tile(H_pad, W_pad, B)
    grid = (B, H_pad // th)

    cost = pl.CostEstimate(
        flops=B * H_pad * W_pad * 15,               # 3 rows x (2 FMA + depth mul)
        transcendentals=0,
        bytes_accessed=B * H_pad * W_pad * 4        # depth in
        + B * 4 * H_pad * W_pad * 4                 # cam_points out
        + B * 16 * 4,                               # inv_K
    )

    out = pl.pallas_call(
        backproject_kernel,
        out_shape=jax.ShapeDtypeStruct((B, 4, H_pad, W_pad), jnp.float32),
        grid=grid,
        in_specs=[
            # inv_K is tiny: keep the whole (B, 16) array in SMEM.
            pl.BlockSpec(memory_space=pltpu.MemorySpace.SMEM),
            pl.BlockSpec((1, 1, th, W_pad), lambda b, t: (b, 0, t, 0)),
        ],
        out_specs=pl.BlockSpec((1, 4, th, W_pad), lambda b, t: (b, 0, t, 0)),
        compiler_params=pltpu.CompilerParams(
            dimension_semantics=("parallel", "parallel"),
            vmem_limit_bytes=32 * 1024 * 1024,      # headroom on v5e, safe on v7x
        ),
        cost_estimate=cost,
    )(inv_K_flat, depth)

    # Strip padding, then collapse (H, W) -> H*W (row-major, matches PyTorch).
    if (H_pad, W_pad) != (H, W):
        out = out[:, :, :H, :W]
    return out.reshape(B, 4, H * W)


# ---------------------------------------------------------------------------
# Pure-JAX reference (mirrors the PyTorch module exactly, incl. pix_coords).
# ---------------------------------------------------------------------------
def make_pix_coords(batch_size, height, width):
    mesh = np.meshgrid(range(width), range(height), indexing='xy')
    id_coords = np.stack(mesh, axis=0).astype(np.float32)          # (2, H, W)
    pix = np.stack([id_coords[0].reshape(-1),
                    id_coords[1].reshape(-1)], axis=0)              # (2, H*W)
    ones = np.ones((1, height * width), dtype=np.float32)
    pix = np.concatenate([pix, ones], axis=0)[None]                 # (1, 3, H*W)
    return jnp.asarray(np.repeat(pix, batch_size, axis=0))          # (B, 3, H*W)


def backproject_depth_ref(depth, inv_K):
    B, _, H, W = depth.shape
    pix = make_pix_coords(B, H, W)
    cam = jnp.einsum('bij,bjk->bik', inv_K[:, :3, :3], pix)
    cam = depth.reshape(B, 1, H * W) * cam
    ones = jnp.ones((B, 1, H * W), dtype=jnp.float32)
    return jnp.concatenate([cam, ones], axis=1)


if __name__ == "__main__":
    B, H, W = 2, 16, 16

    key = jax.random.PRNGKey(0)
    k_depth, k_invk = jax.random.split(key)

    depth = jax.random.uniform(k_depth, (B, 1, H, W), dtype=jnp.float32,
                               minval=0.5, maxval=5.0)
    # Deterministic synthetic inverse intrinsics: identity-ish + small noise.
    base = jnp.eye(4, dtype=jnp.float32)[None].repeat(B, axis=0)
    inv_K = base + 0.01 * jax.random.normal(k_invk, (B, 4, 4), dtype=jnp.float32)

    out = jax.block_until_ready(backproject_depth(depth, inv_K))
    ref = backproject_depth_ref(depth, inv_K)

    assert out.shape == (B, 4, H * W)
    np.testing.assert_allclose(np.asarray(out), np.asarray(ref),
                               rtol=1e-5, atol=1e-5)
    print("KERNEL_OK")
</pallas_src>

<mosaic_0001>
module attributes {stable_mosaic.version = 11 : i64} {
  func.func @backproject_kernel(%arg0: i32, %arg1: i32, %arg2: memref<2x16xf32, #tpu.memory_space<smem>>, %arg3: memref<1x1x16x128xf32, #tpu.memory_space<vmem>>, %arg4: memref<1x4x16x128xf32, #tpu.memory_space<vmem>>) attributes {dimension_semantics = [#tpu.dimension_semantics<parallel>, #tpu.dimension_semantics<parallel>], iteration_bounds = array<i64: 2, 1>, scalar_prefetch = 0 : i64, scratch_operands = 0 : i64, tpu.core_type = #tpu.core_type<tc>, window_params = [{transform_indices = @transform_0, window_bounds = array<i64: 2, 16>}, {transform_indices = @transform_1, window_bounds = array<i64: 1, 1, 16, 128>}, {transform_indices = @transform_2, window_bounds = array<i64: 1, 4, 16, 128>}]} {
    %c16_i32 = arith.constant 16 : i32
    %0 = arith.muli %arg1, %c16_i32 : i32
    %1 = arith.sitofp %0 : i32 to f32
    %2 = tpu.iota {dimensions = array<i32: 1>} : vector<16x128xi32>
    %3 = arith.sitofp %2 : vector<16x128xi32> to vector<16x128xf32>
    %4 = tpu.iota {dimensions = array<i32: 0>} : vector<16x128xi32>
    %5 = arith.sitofp %4 : vector<16x128xi32> to vector<16x128xf32>
    %6 = vector.broadcast %1 : f32 to vector<16x128xf32>
    %7 = arith.addf %5, %6 : vector<16x128xf32>
    %c0 = arith.constant 0 : index
    %c0_0 = arith.constant 0 : index
    %c0_1 = arith.constant 0 : index
    %c0_2 = arith.constant 0 : index
    %8 = vector.load %arg3[%c0, %c0_0, %c0_1, %c0_2] : memref<1x1x16x128xf32, #tpu.memory_space<vmem>>, vector<1x1x16x128xf32>
    %9 = vector.shape_cast %8 : vector<1x1x16x128xf32> to vector<16x128xf32>
    %10 = arith.index_cast %arg0 : i32 to index
    %c0_3 = arith.constant 0 : index
    %11 = memref.load %arg2[%10, %c0_3] : memref<2x16xf32, #tpu.memory_space<smem>>
    %12 = arith.index_cast %arg0 : i32 to index
    %c1 = arith.constant 1 : index
    %13 = memref.load %arg2[%12, %c1] : memref<2x16xf32, #tpu.memory_space<smem>>
    %14 = arith.index_cast %arg0 : i32 to index
    %c2 = arith.constant 2 : index
    %15 = memref.load %arg2[%14, %c2] : memref<2x16xf32, #tpu.memory_space<smem>>
    %16 = vector.broadcast %11 : f32 to vector<16x128xf32>
    %17 = arith.mulf %16, %3 : vector<16x128xf32>
    %18 = vector.broadcast %13 : f32 to vector<16x128xf32>
    %19 = arith.mulf %18, %7 : vector<16x128xf32>
    %20 = arith.addf %17, %19 : vector<16x128xf32>
    %21 = vector.broadcast %15 : f32 to vector<16x128xf32>
    %22 = arith.addf %20, %21 : vector<16x128xf32>
    %23 = arith.mulf %9, %22 : vector<16x128xf32>
    %c0_4 = arith.constant 0 : index
    %c0_5 = arith.constant 0 : index
    %c0_6 = arith.constant 0 : index
    %c0_7 = arith.constant 0 : index
    %24 = vector.load %arg4[%c0_4, %c0_5, %c0_6, %c0_7] : memref<1x4x16x128xf32, #tpu.memory_space<vmem>>, vector<1x1x16x128xf32>
    %25 = vector.shape_cast %24 : vector<1x1x16x128xf32> to vector<16x128xf32>
    %26 = vector.shape_cast %23 : vector<16x128xf32> to vector<1x1x16x128xf32>
    tpu.vector_store %arg4[%c0_4, %c0_5, %c0_6, %c0_7], %26 {strides = array<i32>} : memref<1x4x16x128xf32, #tpu.memory_space<vmem>>, vector<1x1x16x128xf32>,
    %27 = arith.index_cast %arg0 : i32 to index
    %c4 = arith.constant 4 : index
    %28 = memref.load %arg2[%27, %c4] : memref<2x16xf32, #tpu.memory_space<smem>>
    %29 = arith.index_cast %arg0 : i32 to index
    %c5 = arith.constant 5 : index
    %30 = memref.load %arg2[%29, %c5] : memref<2x16xf32, #tpu.memory_space<smem>>
    %31 = arith.index_cast %arg0 : i32 to index
    %c6 = arith.constant 6 : index
    %32 = memref.load %arg2[%31, %c6] : memref<2x16xf32, #tpu.memory_space<smem>>
    %33 = vector.broadcast %28 : f32 to vector<16x128xf32>
    %34 = arith.mulf %33, %3 : vector<16x128xf32>
    %35 = vector.broadcast %30 : f32 to vector<16x128xf32>
    %36 = arith.mulf %35, %7 : vector<16x128xf32>
    %37 = arith.addf %34, %36 : vector<16x128xf32>
    %38 = vector.broadcast %32 : f32 to vector<16x128xf32>
    %39 = arith.addf %37, %38 : vector<16x128xf32>
    %40 = arith.mulf %9, %39 : vector<16x128xf32>
    %c0_8 = arith.constant 0 : index
    %c1_9 = arith.constant 1 : index
    %c0_10 = arith.constant 0 : index
    %c0_11 = arith.constant 0 : index
    %41 = vector.load %arg4[%c0_8, %c1_9, %c0_10, %c0_11] : memref<1x4x16x128xf32, #tpu.memory_space<vmem>>, vector<1x1x16x128xf32>
    %42 = vector.shape_cast %41 : vector<1x1x16x128xf32> to vector<16x128xf32>
    %43 = vector.shape_cast %40 : vector<16x128xf32> to vector<1x1x16x128xf32>
    tpu.vector_store %arg4[%c0_8, %c1_9, %c0_10, %c0_11], %43 {strides = array<i32>} : memref<1x4x16x128xf32, #tpu.memory_space<vmem>>, vector<1x1x16x128xf32>,
    %44 = arith.index_cast %arg0 : i32 to index
    %c8 = arith.constant 8 : index
    %45 = memref.load %arg2[%44, %c8] : memref<2x16xf32, #tpu.memory_space<smem>>
    %46 = arith.index_cast %arg0 : i32 to index
    %c9 = arith.constant 9 : index
    %47 = memref.load %arg2[%46, %c9] : memref<2x16xf32, #tpu.memory_space<smem>>
    %48 = arith.index_cast %arg0 : i32 to index
    %c10 = arith.constant 10 : index
    %49 = memref.load %arg2[%48, %c10] : memref<2x16xf32, #tpu.memory_space<smem>>
    %50 = vector.broadcast %45 : f32 to vector<16x128xf32>
    %51 = arith.mulf %50, %3 : vector<16x128xf32>
    %52 = vector.broadcast %47 : f32 to vector<16x128xf32>
    %53 = arith.mulf %52, %7 : vector<16x128xf32>
    %54 = arith.addf %51, %53 : vector<16x128xf32>
    %55 = vector.broadcast %49 : f32 to vector<16x128xf32>
    %56 = arith.addf %54, %55 : vector<16x128xf32>
    %57 = arith.mulf %9, %56 : vector<16x128xf32>
    %c0_12 = arith.constant 0 : index
    %c2_13 = arith.constant 2 : index
    %c0_14 = arith.constant 0 : index
    %c0_15 = arith.constant 0 : index
    %58 = vector.load %arg4[%c0_12, %c2_13, %c0_14, %c0_15] : memref<1x4x16x128xf32, #tpu.memory_space<vmem>>, vector<1x1x16x128xf32>
    %59 = vector.shape_cast %58 : vector<1x1x16x128xf32> to vector<16x128xf32>
    %60 = vector.shape_cast %57 : vector<16x128xf32> to vector<1x1x16x128xf32>
    tpu.vector_store %arg4[%c0_12, %c2_13, %c0_14, %c0_15], %60 {strides = array<i32>} : memref<1x4x16x128xf32, #tpu.memory_space<vmem>>, vector<1x1x16x128xf32>,
    %cst = arith.constant 1.000000e+00 : f32
    %61 = vector.broadcast %cst : f32 to vector<16x128xf32>
    %c0_16 = arith.constant 0 : index
    %c3 = arith.constant 3 : index
    %c0_17 = arith.constant 0 : index
    %c0_18 = arith.constant 0 : index
    %62 = vector.load %arg4[%c0_16, %c3, %c0_17, %c0_18] : memref<1x4x16x128xf32, #tpu.memory_space<vmem>>, vector<1x1x16x128xf32>
    %63 = vector.shape_cast %62 : vector<1x1x16x128xf32> to vector<16x128xf32>
    %64 = vector.shape_cast %61 : vector<16x128xf32> to vector<1x1x16x128xf32>
    tpu.vector_store %arg4[%c0_16, %c3, %c0_17, %c0_18], %64 {strides = array<i32>} : memref<1x4x16x128xf32, #tpu.memory_space<vmem>>, vector<1x1x16x128xf32>,
    return
  }
  func.func @transform_0(%arg0: i32, %arg1: i32) -> (i32, i32) {
    %c0_i32 = arith.constant 0 : i32
    %c0_i32_0 = arith.constant 0 : i32
    %c0_i32_1 = arith.constant 0 : i32
    return %c0_i32, %c0_i32_0 : i32, i32
  }
  func.func @transform_1(%arg0: i32, %arg1: i32) -> (i32, i32, i32, i32) {
    %c0_i32 = arith.constant 0 : i32
    %c0_i32_0 = arith.constant 0 : i32
    %c0_i32_1 = arith.constant 0 : i32
    return %arg0, %c0_i32, %arg1, %c0_i32_0 : i32, i32, i32, i32
  }
  func.func @transform_2(%arg0: i32, %arg1: i32) -> (i32, i32, i32, i32) {
    %c0_i32 = arith.constant 0 : i32
    %c0_i32_0 = arith.constant 0 : i32
    %c0_i32_1 = arith.constant 0 : i32
    return %arg0, %c0_i32, %arg1, %c0_i32_0 : i32, i32, i32, i32
  }
}

</mosaic_0001>

<llo_original>
// kernel: tpu_custom_call.1
$region0: #{tpu_custom_call.1}
  #allocation0 [shape = 'u32[]', space=smem, size = 0x4, offset = 0x4, fixed_abs, tag = 'smem constant byte address 0x4 - core index']
  #allocation1 [shape = 'u32[144,128]{1,0:T(1,128)}', space=vmem, size = 0x12000, scoped, tag = 'internal scratch']
  %s0 = inlined_call_operand.hbm [shape: f32[2,16], index: 0, kind: input, shape index: {}]
  %s1 = inlined_call_operand.hbm [shape: f32[2,1,16,128], index: 1, kind: input, shape index: {}]
  %s2 = inlined_call_operand.hbm [shape: f32[2,4,16,128], index: 2, kind: output, shape index: {}]
  %s3 = sld [smem:[#allocation0]]
  $region49: #{tpu_custom_call.1} parent=0
    _
  %s5 = ssub.s32 1, %s3
  %s6 = scalar_select 0, %s5, %s3
  $region1: #{tpu_custom_call.1} parent=0
    #allocation2 [shape = 'u8[1024]{0}', space=smem, size = 0x400, scoped, tag = 'input window, operand 0, single buffered']
    #allocation3 [shape = 's32[2]{0}', space=sflag, size = 0x8, scoped, tag = 'scoped memory for tpu_custom_call.1']
    #allocation4 [shape = 's32[2]{0}', space=sflag, size = 0x8, scoped, tag = 'scoped memory for tpu_custom_call.1']
    #allocation5 [shape = 's32[2]{0}', space=sflag, size = 0x8, scoped, tag = 'scoped memory for tpu_custom_call.1']
    #allocation6 [shape = 'u8[16384]{0}', space=vmem, size = 0x4000, scoped, tag = 'input window, operand 1']
    #allocation7 [shape = 'u8[65536]{0}', space=vmem, size = 0x10000, scoped, tag = 'output window, operand 0']
    %7 = vsyncpa [#allocation5], 0
    %8 = vsyncpa [#allocation3], 0
    %s9 = scalar_lea.sflag [#allocation3], 1
    %10 = vsyncpa %s9, 0
    %11 = vsyncpa [#allocation4], 0
    %s12 = scalar_lea.sflag [#allocation4], 1
    %13 = vsyncpa %s12, 0
    loop: start=0, step=1, limit=4
    $region2: #{tpu_custom_call.1} parent=1 // loop_pre_header
      _
    $region3: #{tpu_custom_call.1} parent=1 // loop_header
      %s15 = sphi 0, %s19
      %p16 = scmp.ge.s32.totalorder %s15, 4
      %s22 = sphi 0, %s34
      %s23 = sphi 0, %s30
      %s24 = sphi 0, %s22
      %s25 = sphi 0, %s23
      %s26 = sphi 0, %s24
      %s27 = sphi 0, %s25
      %s35 = sphi 0, %s35
      %s37 = sphi 0, %s35
      %s38 = sphi 0, %s37
      %s52 = sphi 0, %s38
      %s60 = sphi 0, %s62
      %s63 = sphi 0, %s60
      %s64 = sphi 0, %s63
      %s80 = sphi 0, %s64
      %s88 = sphi 0, %s90
      %s91 = sphi 0, %s88
      %s92 = sphi 0, %s91
      %s108 = sphi 0, %s92
    $region4: #{tpu_custom_call.1} parent=1 // loop_header_branch
      %18 = sbr.rel (%p16) target = $region8
    $region5: #{tpu_custom_call.1} parent=1 // loop_body
      %s20 = ssub.s32 %s15, 1
      %s21 = ssub.s32 %s15, 2
      %s28 = sadd.s32 1, %s23
      %p29 = scmp.ge.s32.totalorder %s28, 1
      %s30 = scalar_select %p29, 0, %s28
      %s31 = sadd.s32 1, %s22
      %s32 = scalar_select %p29, %s31, %s22
      %p33 = scmp.ge.s32.totalorder %s32, 2
      %s34 = scalar_select %p33, 0, %s32
      %s36 = sadd.s32 %s35, 1
      %p39 = scmp.eq.s32.totalorder %s15, 1
      %p40 = scmp.ne.s32.totalorder %s35, %s37
      %p41 = scmp.eq.s32.totalorder %s15, 0
      %p42 = por %p40, %p41
      %p43 = scmp.ne.s32.totalorder %s35, %s37
      %p44 = scmp.eq.s32.totalorder %s20, 1
      %p45 = por %p43, %p44
      %p46 = scmp.ne.s32.totalorder %s37, %s38
      %p47 = scmp.eq.s32.totalorder %s20, 0
      %p48 = por %p46, %p47
      %p49 = scmp.ne.s32.totalorder %s37, %s38
      %p50 = scmp.eq.s32.totalorder %s21, 1
      %p51 = por %p49, %p50
      %p53 = scmp.ne.s32.totalorder %s38, %s52
      %p54 = scmp.eq.s32.totalorder %s21, 0
      %p55 = por %p53, %p54
      %s56 = ssub.s32 %s22, %s34
      %s57 = ssub.s32 %s23, %s30
      %s58 = sor.u32 %s56, %s57
      %p59 = scmp.eq.s32.totalorder %s58, 0
      %s61 = sadd.s32 %s60, 1
      %s62 = scalar_select %p59, %s60, %s61
      %p65 = pneg %p59
      %p66 = scmp.eq.s32.totalorder %s15, 1
      %p67 = por %p65, %p66
      %p68 = scmp.ne.s32.totalorder %s60, %s63
      %p69 = scmp.eq.s32.totalorder %s15, 0
      %p70 = por %p68, %p69
      %p71 = scmp.ne.s32.totalorder %s60, %s63
      %p72 = scmp.eq.s32.totalorder %s20, 1
      %p73 = por %p71, %p72
      %p74 = scmp.ne.s32.totalorder %s63, %s64
      %p75 = scmp.eq.s32.totalorder %s20, 0
      %p76 = por %p74, %p75
      %p77 = scmp.ne.s32.totalorder %s63, %s64
      %p78 = scmp.eq.s32.totalorder %s21, 1
      %p79 = por %p77, %p78
      %p81 = scmp.ne.s32.totalorder %s64, %s80
      %p82 = scmp.eq.s32.totalorder %s21, 0
      %p83 = por %p81, %p82
      %s84 = ssub.s32 %s22, %s34
      %s85 = ssub.s32 %s23, %s30
      %s86 = sor.u32 %s84, %s85
      %p87 = scmp.eq.s32.totalorder %s86, 0
      %s89 = sadd.s32 %s88, 1
      %s90 = scalar_select %p87, %s88, %s89
      %p93 = pneg %p87
      %p94 = scmp.eq.s32.totalorder %s15, 1
      %p95 = por %p93, %p94
      %p96 = scmp.ne.s32.totalorder %s88, %s91
      %p97 = scmp.eq.s32.totalorder %s15, 0
      %p98 = por %p96, %p97
      %p99 = scmp.ne.s32.totalorder %s88, %s91
      %p100 = scmp.eq.s32.totalorder %s20, 1
      %p101 = por %p99, %p100
      %p102 = scmp.ne.s32.totalorder %s91, %s92
      %p103 = scmp.eq.s32.totalorder %s20, 0
      %p104 = por %p102, %p103
      %p105 = scmp.ne.s32.totalorder %s91, %s92
      %p106 = scmp.eq.s32.totalorder %s21, 1
      %p107 = por %p105, %p106
      %p109 = scmp.ne.s32.totalorder %s92, %s108
      %p110 = scmp.eq.s32.totalorder %s21, 0
      %p111 = por %p109, %p110
      %p112 = scmp.le.s32.totalorder 1, %s15
      %p113 = scmp.lt.s32.totalorder %s15, 3
      %p114 = pnand %p112, %p113
      %p115 = pneg %p114
      // Predicated region
      $region9: #{tpu_custom_call.1} parent=5 // pred_check
        _
      $region10: #{tpu_custom_call.1} parent=5 // pred_check_branch
        %117 = sbr.rel (%p114) target = $region12
      $region11: #{tpu_custom_call.1} parent=5 // pred_region
        %s118 = ssub.s32 %s15, 1
        // Predicated region
        $region13: #{tpu_custom_call.1} parent=11 // pred_check
          %p119 = pneg %p48
        $region14: #{tpu_custom_call.1} parent=11 // pred_check_branch
          %121 = sbr.rel (%p119) target = $region16
        $region15: #{tpu_custom_call.1} parent=11 // pred_region
          %s123 = ssub.s32 32, 32
          %124 = vsyncadd [#allocation5], %s123
          %127 = dma.hbm_to_smem %s0, 32, [#allocation2], [#allocation5]
        $region16: #{tpu_custom_call.1} parent=11 // pred_fallthru
          _
      $region12: #{tpu_custom_call.1} parent=5 // pred_fallthru
        _
      %p128 = scmp.lt.s32.totalorder %s15, 2
      // Predicated region
      $region17: #{tpu_custom_call.1} parent=5 // pred_check
        %p129 = pneg %p128
      $region18: #{tpu_custom_call.1} parent=5 // pred_check_branch
        %131 = sbr.rel (%p129) target = $region20
      $region19: #{tpu_custom_call.1} parent=5 // pred_region
        // Predicated region
        $region21: #{tpu_custom_call.1} parent=19 // pred_check
          %p132 = pneg %p70
        $region22: #{tpu_custom_call.1} parent=19 // pred_check_branch
          %134 = sbr.rel (%p132) target = $region24
        $region23: #{tpu_custom_call.1} parent=19 // pred_region
          %s135 = sand.u32 %s60, 1
          %s136 = scalar_lea.sflag [#allocation3], %s135
          %s137 = sand.u32 %s60, 1
          %s138 = smul.addr %s137, 16
          %s139 = scalar_lea.vmem [#allocation6], %s138
          %s140 = smul.u32 2, %s23
          %s142 = ssub.s32 256, 256
          %143 = vsyncadd %s136, %s142
          %s144 = smul.addr %s22, 2
          %s145 = sadd.s32 %s140, %s144
          %s146 = smul.addr %s145, 128
          %s147 = scalar_lea.hbm %s1, %s146
          %s148 = sshll.u32 %s139, 4
          %s149 = int_to_ptr.vmem [resolvable:$true] %s148
          %154 = dma.hbm_to_vmem [thread:$0]  %s147, 256, %s149, %s136, 128, 128, 8
        $region24: #{tpu_custom_call.1} parent=19 // pred_fallthru
          _
      $region20: #{tpu_custom_call.1} parent=5 // pred_fallthru
        _
      %p155 = scmp.le.s32.totalorder 1, %s15
      %p156 = scmp.lt.s32.totalorder %s15, 3
      %p157 = pnand %p155, %p156
      %p158 = pneg %p157
      // Predicated region
      $region25: #{tpu_custom_call.1} parent=5 // pred_check
        _
      $region26: #{tpu_custom_call.1} parent=5 // pred_check_branch
        %160 = sbr.rel (%p157) target = $region28
      $region27: #{tpu_custom_call.1} parent=5 // pred_region
        %s161 = ssub.s32 %s15, 1
        // Predicated region
        $region29: #{tpu_custom_call.1} parent=27 // pred_check
          %p162 = pneg %p48
        $region30: #{tpu_custom_call.1} parent=27 // pred_check_branch
          %164 = sbr.rel (%p162) target = $region32
        $region31: #{tpu_custom_call.1} parent=27 // pred_region
          %165 = dma.done [#allocation5], 32
        $region32: #{tpu_custom_call.1} parent=27 // pred_fallthru
          _
        %s166 = sand.u32 %s63, 1
        %s167 = scalar_lea.sflag [#allocation3], %s166
        %s168 = sand.u32 %s63, 1
        %s169 = smul.addr %s168, 16
        %s170 = scalar_lea.vmem [#allocation6], %s169
        // Predicated region
        $region33: #{tpu_custom_call.1} parent=27 // pred_check
          %p171 = pneg %p76
        $region34: #{tpu_custom_call.1} parent=27 // pred_check_branch
          %173 = sbr.rel (%p171) target = $region36
        $region35: #{tpu_custom_call.1} parent=27 // pred_region
          %174 = dma.done %s167, 256
        $region36: #{tpu_custom_call.1} parent=27 // pred_fallthru
          _
        %175 = sfence
        %p176 = pneg %p48
        %p177 = pneg %p45
        %s178 = sand.u32 %s63, 1
        %s179 = scalar_lea.sflag [#allocation3], %s178
        %s180 = sand.u32 %s63, 1
        %s181 = smul.addr %s180, 16
        %s182 = scalar_lea.vmem [#allocation6], %s181
        %p183 = pneg %p76
        %p184 = pneg %p73
        %p185 = pneg %p104
        %p186 = pneg %p101
        %s187 = sand.u32 %s91, 1
        %s188 = scalar_lea.sflag [#allocation4], %s187
        %s189 = sand.u32 %s91, 1
        %s190 = smul.addr %s189, 64
        %s191 = scalar_lea.vmem [#allocation7], %s190
        %s192 = smul.u32 2, %s25
        %s193 = smul.u32 2, %s25
        %s194 = smul.u32 %s25, 16
        %s195 = scvt.s32.f32 %s194
        %v196 = vlaneseq
        %v197 = vand.u32 %v196, 127
        %v198 = vcvt.s32.f32 %v197
        %v199 = vlaneseq
        %v200 = vshrl.u32 %v199, 7
        %v201 = vadd.s32 %v200, 8
        %v202 = vcvt.s32.f32 %v200
        %v203 = vcvt.s32.f32 %v201
        %v204 = vstv %s195
        %v205 = vadd.f32 %v202, %v204
        %v206 = vadd.f32 %v203, %v204
        %v207 = vld [vmem:[%s170] sm:$0xff]
        %v208 = vld [vmem:[%s170 + $0x8] sm:$0xff]
        %s209 = smul.u32 %s24, 128
        %s210 = sld [smem:[#allocation2 + %s209]]
        %s211 = sadd.s32 %s209, 1
        %s212 = sld [smem:[#allocation2 + %s211]]
        %s213 = sadd.s32 %s209, 2
        %s214 = sld [smem:[#allocation2 + %s213]]
        %v215 = vstv %s210
        %v216 = vmul.f32 %v215, %v198
        %v217 = vstv %s212
        %v218 = vmul.f32 %v217, %v205
        %v219 = vmul.f32 %v217, %v206
        %v220 = vadd.f32 %v216, %v218
        %v221 = vadd.f32 %v216, %v219
        %v222 = vstv %s214
        %v223 = vadd.f32 %v220, %v222
        %v224 = vadd.f32 %v221, %v222
        %v225 = vmul.f32 %v207, %v223
        %v226 = vmul.f32 %v208, %v224
        %227 = vst [vmem:[%s191] sm:$0xff] %v225
        %228 = vst [vmem:[%s191 + $0x8] sm:$0xff] %v226
        %s229 = sadd.s32 %s209, 4
        %s230 = sld [smem:[#allocation2 + %s229]]
        %s231 = sadd.s32 %s209, 5
        %s232 = sld [smem:[#allocation2 + %s231]]
        %s233 = sadd.s32 %s209, 6
        %s234 = sld [smem:[#allocation2 + %s233]]
        %v235 = vstv %s230
        %v236 = vmul.f32 %v235, %v198
        %v237 = vstv %s232
        %v238 = vmul.f32 %v237, %v205
        %v239 = vmul.f32 %v237, %v206
        %v240 = vadd.f32 %v236, %v238
        %v241 = vadd.f32 %v236, %v239
        %v242 = vstv %s234
        %v243 = vadd.f32 %v240, %v242
        %v244 = vadd.f32 %v241, %v242
        %v245 = vmul.f32 %v207, %v243
        %v246 = vmul.f32 %v208, %v244
        %s247 = scalar_lea.vmem %s191, 16 [#allocation7]
        %248 = vst [vmem:[%s247] sm:$0xff] %v245
        %249 = vst [vmem:[%s247 + $0x8] sm:$0xff] %v246
        %s250 = sadd.s32 %s209, 8
        %s251 = sld [smem:[#allocation2 + %s250]]
        %s252 = sadd.s32 %s209, 9
        %s253 = sld [smem:[#allocation2 + %s252]]
        %s254 = sadd.s32 %s209, 10
        %s255 = sld [smem:[#allocation2 + %s254]]
        %v256 = vstv %s251
        %v257 = vmul.f32 %v256, %v198
        %v258 = vstv %s253
        %v259 = vmul.f32 %v258, %v205
        %v260 = vmul.f32 %v258, %v206
        %v261 = vadd.f32 %v257, %v259
        %v262 = vadd.f32 %v257, %v260
        %v263 = vstv %s255
        %v264 = vadd.f32 %v261, %v263
        %v265 = vadd.f32 %v262, %v263
        %v266 = vmul.f32 %v207, %v264
        %v267 = vmul.f32 %v208, %v265
        %s268 = scalar_lea.vmem %s191, 32 [#allocation7]
        %269 = vst [vmem:[%s268] sm:$0xff] %v266
        %270 = vst [vmem:[%s268 + $0x8] sm:$0xff] %v267
        %s271 = scalar_lea.vmem %s191, 48 [#allocation7]
        %272 = vst [vmem:[%s271] sm:$0xff] 1.0
        %273 = vst [vmem:[%s271 + $0x8] sm:$0xff] 1.0
        %s274 = sand.u32 %s91, 1
        %s275 = scalar_lea.sflag [#allocation4], %s274
        %s276 = sand.u32 %s91, 1
        %s277 = smul.addr %s276, 64
        %s278 = scalar_lea.vmem [#allocation7], %s277
        // Predicated region
        $region37: #{tpu_custom_call.1} parent=27 // pred_check
          %p279 = pneg %p101
        $region38: #{tpu_custom_call.1} parent=27 // pred_check_branch
          %281 = sbr.rel (%p279) target = $region40
        $region39: #{tpu_custom_call.1} parent=27 // pred_region
          %s282 = smul.u32 2, %s25
          %s284 = ssub.s32 1024, 1024
          %285 = vsyncadd %s275, %s284
          %s286 = smul.addr %s24, 8
          %s287 = sadd.s32 %s282, %s286
          %s288 = smul.addr %s287, 128
          %s289 = scalar_lea.hbm %s2, %s288
          %s290 = sshll.u32 %s278, 4
          %s291 = int_to_ptr.vmem [resolvable:$true] %s290
          %296 = dma.vmem_to_hbm [thread:$0]  %s291, 1024, %s289, %s275, 128, 128, 8
        $region40: #{tpu_custom_call.1} parent=27 // pred_fallthru
          _
      $region28: #{tpu_custom_call.1} parent=5 // pred_fallthru
        _
      %p297 = scmp.le.s32.totalorder 2, %s15
      // Predicated region
      $region41: #{tpu_custom_call.1} parent=5 // pred_check
        %p298 = pneg %p297
      $region42: #{tpu_custom_call.1} parent=5 // pred_check_branch
        %300 = sbr.rel (%p298) target = $region44
      $region43: #{tpu_custom_call.1} parent=5 // pred_region
        %s301 = ssub.s32 %s15, 2
        // Predicated region
        $region45: #{tpu_custom_call.1} parent=43 // pred_check
          %p302 = pneg %p107
        $region46: #{tpu_custom_call.1} parent=43 // pred_check_branch
          %304 = sbr.rel (%p302) target = $region48
        $region47: #{tpu_custom_call.1} parent=43 // pred_region
          %s305 = sand.u32 %s92, 1
          %s306 = scalar_lea.sflag [#allocation4], %s305
          %s307 = sand.u32 %s92, 1
          %s308 = smul.addr %s307, 64
          %s309 = scalar_lea.vmem [#allocation7], %s308
          %310 = dma.done %s306, 1024
        $region48: #{tpu_custom_call.1} parent=43 // pred_fallthru
          _
      $region44: #{tpu_custom_call.1} parent=5 // pred_fallthru
        _
    $region6: #{tpu_custom_call.1} parent=1 // loop_footer
      %s19 = sadd.s32 1, %s15
    $region7: #{tpu_custom_call.1} parent=1 // loop_footer_branch
      %14 = sbr.rel target = $region3
    $region8: #{tpu_custom_call.1} parent=1 // loop_exit
      _
    %311 = vsyncpa [#allocation3], 1
    %s312 = scalar_lea.sflag [#allocation3], 1
    %313 = vsyncpa %s312, 1
    %314 = vsyncpa [#allocation4], 1
    %s315 = scalar_lea.sflag [#allocation4], 1
    %316 = vsyncpa %s315, 1
    %317 = vsyncpa [#allocation5], 1
    %s318 = scalar_lea.sflag [#allocation5], 1
    %319 = vsyncpa %s318, 1

</llo_original>
